<compile_context>
chip_gen: v7x
topology: tpu7x:2x2x1
jax: 0.10.0
libtpu: 0.0.40
codegen_flags: <defaults>
</compile_context>

<pallas_src>
import jax
import jax.numpy as jnp
from jax.experimental import pallas as pl
from jax.experimental.pallas import tpu as pltpu


def mlp_kernel(x_ref, w1_ref, b1_ref, w2_ref, b2_ref, o_ref):
    # First linear + ReLU (MXU matmul, VPU bias add / max).
    h = jnp.dot(x_ref[...], w1_ref[...], preferred_element_type=jnp.float32)
    h = jnp.maximum(h + b1_ref[...], 0.0)
    # Second linear + ReLU (hidden activations kept in f32).
    y = jnp.dot(h, w2_ref[...], preferred_element_type=jnp.float32)
    y = jnp.maximum(y + b2_ref[...], 0.0)
    o_ref[...] = y.astype(o_ref.dtype)


# Default batch tile: 16384 rows of f32 x = 6.25 MiB per buffer (x2 for double
# buffering) + tiny output/weight buffers.  Made safe on every chip by passing
# an explicit vmem_limit_bytes below.
DEFAULT_BM = 16384


def _round_up(n, m):
    return -(-n // m) * m


def outer_module_forward(x, w1, b1, w2, b2, *, bm=DEFAULT_BM):
    """x: [B, 100] f32; w1: [100, 10]; b1: [1, 10]; w2: [10, 2]; b2: [1, 2]."""
    B, F = x.shape
    H = w1.shape[1]
    O = w2.shape[1]

    # Effective batch tile: multiple of 8 (sublane).  Cap it so the grid has at
    # least 2 (balanced) steps whenever B allows -> both v7x TensorCores get
    # work under dimension_semantics=("parallel",).
    bm_req = max(8, _round_up(bm, 8))
    if B > 8:
        bm_eff = min(bm_req, _round_up(pl.cdiv(B, 2), 8))
    else:
        bm_eff = 8

    # No pre-padding of x: the last block may be ragged; Pallas masks its
    # out-of-bounds output writes, and garbage OOB rows never contaminate
    # in-bounds rows (row-wise-independent compute only).
    grid = (pl.cdiv(B, bm_eff),)

    param_elems = F * H + H + H * O + O
    cost = pl.CostEstimate(
        flops=2 * B * F * H + 2 * B * H * O + 2 * B * (H + O),
        transcendentals=0,
        bytes_accessed=(B * F + B * O + param_elems) * 4,
    )

    # Double-buffered x + out tiles + params, plus headroom for Mosaic scratch.
    vmem_limit = max(4 * (2 * bm_eff * (F + O) + param_elems) + (8 << 20),
                     16 << 20)

    return pl.pallas_call(
        mlp_kernel,
        out_shape=jax.ShapeDtypeStruct((B, O), x.dtype),
        grid=grid,
        in_specs=[
            pl.BlockSpec((bm_eff, F), lambda i: (i, 0)),   # x: tiled over batch
            pl.BlockSpec((F, H), lambda i: (0, 0)),        # w1: VMEM-resident
            pl.BlockSpec((1, H), lambda i: (0, 0)),        # b1: VMEM-resident
            pl.BlockSpec((H, O), lambda i: (0, 0)),        # w2: VMEM-resident
            pl.BlockSpec((1, O), lambda i: (0, 0)),        # b2: VMEM-resident
        ],
        out_specs=pl.BlockSpec((bm_eff, O), lambda i: (i, 0)),
        compiler_params=pltpu.CompilerParams(
            dimension_semantics=("parallel",),             # v7x: 2 TCs
            vmem_limit_bytes=int(vmem_limit),
        ),
        cost_estimate=cost,
    )(x, w1, b1, w2, b2)


def init_params(key):
    # Deterministic init mimicking torch.nn.Linear's uniform(-1/sqrt(fan_in), +).
    k1, k2, k3, k4 = jax.random.split(key, 4)
    lim1 = 1.0 / jnp.sqrt(100.0)
    lim2 = 1.0 / jnp.sqrt(10.0)
    w1 = jax.random.uniform(k1, (100, 10), jnp.float32, -lim1, lim1)  # [in, out]
    b1 = jax.random.uniform(k2, (1, 10), jnp.float32, -lim1, lim1)
    w2 = jax.random.uniform(k3, (10, 2), jnp.float32, -lim2, lim2)    # [in, out]
    b2 = jax.random.uniform(k4, (1, 2), jnp.float32, -lim2, lim2)
    return w1, b1, w2, b2


def reference_forward(x, w1, b1, w2, b2):
    h = jnp.maximum(x @ w1 + b1, 0.0)
    return jnp.maximum(h @ w2 + b2, 0.0)


if __name__ == "__main__":
    key = jax.random.PRNGKey(0)
    kx1, kx2, kp = jax.random.split(key, 3)
    w1, b1, w2, b2 = init_params(kp)

    # Case 1: small batch, forced-small tile -> 4-step grid with a ragged last
    # block (no wrapper-side padding), VMEM-resident weights.
    B1 = 50
    x1 = jax.random.normal(kx1, (B1, 100), jnp.float32)
    out1 = jax.block_until_ready(
        outer_module_forward(x1, w1, b1, w2, b2, bm=16))
    ref1 = reference_forward(x1, w1, b1, w2, b2)
    assert out1.shape == (B1, 2), out1.shape
    assert jnp.allclose(out1, ref1, atol=1e-5, rtol=1e-5), "mismatch (tiled/ragged)"

    # Case 2: default tile, B divisible -> tile capped to 32 rows, grid=(2,)
    # so both v7x TensorCores would get one tile each.
    B2 = 64
    x2 = jax.random.normal(kx2, (B2, 100), jnp.float32)
    out2 = jax.block_until_ready(outer_module_forward(x2, w1, b1, w2, b2))
    ref2 = reference_forward(x2, w1, b1, w2, b2)
    assert out2.shape == (B2, 2), out2.shape
    assert jnp.allclose(out2, ref2, atol=1e-5, rtol=1e-5), "mismatch (2-step)"

    # Case 3: default tile, B not a multiple of 8 -> grid=(2,) with a ragged
    # last block handled entirely by Pallas masking (no jnp.pad).
    B3 = 50
    out3 = jax.block_until_ready(outer_module_forward(x1, w1, b1, w2, b2))
    assert out3.shape == (B3, 2), out3.shape
    assert jnp.allclose(out3, ref1, atol=1e-5, rtol=1e-5), "mismatch (default/ragged)"

    # Note: for tiny batches like these, plain jnp would win on dispatch
    # overhead; the kernel targets B in the thousands (16384-row tiles).
    print("KERNEL_OK")
</pallas_src>

<mosaic_0001>
module attributes {stable_mosaic.version = 11 : i64} {
  func.func @mlp_kernel(%arg0: i32, %arg1: memref<16x100xf32, #tpu.memory_space<vmem>>, %arg2: memref<100x10xf32, #tpu.memory_space<vmem>>, %arg3: memref<1x10xf32, #tpu.memory_space<vmem>>, %arg4: memref<10x2xf32, #tpu.memory_space<vmem>>, %arg5: memref<1x2xf32, #tpu.memory_space<vmem>>, %arg6: memref<16x2xf32, #tpu.memory_space<vmem>>) attributes {dimension_semantics = [#tpu.dimension_semantics<parallel>], iteration_bounds = array<i64: 4>, scalar_prefetch = 0 : i64, scratch_operands = 0 : i64, tpu.core_type = #tpu.core_type<tc>, window_params = [{transform_indices = @transform_0, window_bounds = array<i64: 16, 100>}, {pipeline_mode = #tpu.pipeline_mode<synchronous>, transform_indices = @transform_1, window_bounds = array<i64: 100, 10>}, {pipeline_mode = #tpu.pipeline_mode<synchronous>, transform_indices = @transform_2, window_bounds = array<i64: 1, 10>}, {pipeline_mode = #tpu.pipeline_mode<synchronous>, transform_indices = @transform_3, window_bounds = array<i64: 10, 2>}, {pipeline_mode = #tpu.pipeline_mode<synchronous>, transform_indices = @transform_4, window_bounds = array<i64: 1, 2>}, {transform_indices = @transform_5, window_bounds = array<i64: 16, 2>}]} {
    %c0 = arith.constant 0 : index
    %c0_0 = arith.constant 0 : index
    %0 = vector.load %arg1[%c0, %c0_0] : memref<16x100xf32, #tpu.memory_space<vmem>>, vector<16x100xf32>
    %c0_1 = arith.constant 0 : index
    %c0_2 = arith.constant 0 : index
    %1 = vector.load %arg2[%c0_1, %c0_2] : memref<100x10xf32, #tpu.memory_space<vmem>>, vector<100x10xf32>
    %cst = arith.constant dense<0.000000e+00> : vector<16x10xf32>
    %2 = tpu.matmul %0, %1, %cst {dimension_numbers = #tpu.dot_dimension_numbers<[1], [0], [0], [1], [0, 0, 1, 1], [], []>} : vector<16x100xf32>, vector<100x10xf32>, vector<16x10xf32> -> vector<16x10xf32>
    %c0_3 = arith.constant 0 : index
    %c0_4 = arith.constant 0 : index
    %3 = vector.load %arg3[%c0_3, %c0_4] : memref<1x10xf32, #tpu.memory_space<vmem>>, vector<1x10xf32>
    %4 = vector.broadcast %3 : vector<1x10xf32> to vector<16x10xf32>
    %5 = arith.addf %2, %4 : vector<16x10xf32>
    %cst_5 = arith.constant 0.000000e+00 : f32
    %6 = vector.broadcast %cst_5 : f32 to vector<16x10xf32>
    %7 = arith.maximumf %5, %6 : vector<16x10xf32>
    %c0_6 = arith.constant 0 : index
    %c0_7 = arith.constant 0 : index
    %8 = vector.load %arg4[%c0_6, %c0_7] : memref<10x2xf32, #tpu.memory_space<vmem>>, vector<10x2xf32>
    %cst_8 = arith.constant dense<0.000000e+00> : vector<16x2xf32>
    %9 = tpu.matmul %7, %8, %cst_8 {dimension_numbers = #tpu.dot_dimension_numbers<[1], [0], [0], [1], [0, 0, 1, 1], [], []>} : vector<16x10xf32>, vector<10x2xf32>, vector<16x2xf32> -> vector<16x2xf32>
    %c0_9 = arith.constant 0 : index
    %c0_10 = arith.constant 0 : index
    %10 = vector.load %arg5[%c0_9, %c0_10] : memref<1x2xf32, #tpu.memory_space<vmem>>, vector<1x2xf32>
    %11 = vector.broadcast %10 : vector<1x2xf32> to vector<16x2xf32>
    %12 = arith.addf %9, %11 : vector<16x2xf32>
    %cst_11 = arith.constant 0.000000e+00 : f32
    %13 = vector.broadcast %cst_11 : f32 to vector<16x2xf32>
    %14 = arith.maximumf %12, %13 : vector<16x2xf32>
    %c0_12 = arith.constant 0 : index
    %c0_13 = arith.constant 0 : index
    %15 = vector.load %arg6[%c0_12, %c0_13] : memref<16x2xf32, #tpu.memory_space<vmem>>, vector<16x2xf32>
    tpu.vector_store %arg6[%c0_12, %c0_13], %14 {strides = array<i32>} : memref<16x2xf32, #tpu.memory_space<vmem>>, vector<16x2xf32>,
    return
  }
  func.func @transform_0(%arg0: i32) -> (i32, i32) {
    %c0_i32 = arith.constant 0 : i32
    %c0_i32_0 = arith.constant 0 : i32
    return %arg0, %c0_i32 : i32, i32
  }
  func.func @transform_1(%arg0: i32) -> (i32, i32) {
    %c0_i32 = arith.constant 0 : i32
    %c0_i32_0 = arith.constant 0 : i32
    %c0_i32_1 = arith.constant 0 : i32
    return %c0_i32, %c0_i32_0 : i32, i32
  }
  func.func @transform_2(%arg0: i32) -> (i32, i32) {
    %c0_i32 = arith.constant 0 : i32
    %c0_i32_0 = arith.constant 0 : i32
    %c0_i32_1 = arith.constant 0 : i32
    return %c0_i32, %c0_i32_0 : i32, i32
  }
  func.func @transform_3(%arg0: i32) -> (i32, i32) {
    %c0_i32 = arith.constant 0 : i32
    %c0_i32_0 = arith.constant 0 : i32
    %c0_i32_1 = arith.constant 0 : i32
    return %c0_i32, %c0_i32_0 : i32, i32
  }
  func.func @transform_4(%arg0: i32) -> (i32, i32) {
    %c0_i32 = arith.constant 0 : i32
    %c0_i32_0 = arith.constant 0 : i32
    %c0_i32_1 = arith.constant 0 : i32
    return %c0_i32, %c0_i32_0 : i32, i32
  }
  func.func @transform_5(%arg0: i32) -> (i32, i32) {
    %c0_i32 = arith.constant 0 : i32
    %c0_i32_0 = arith.constant 0 : i32
    return %arg0, %c0_i32 : i32, i32
  }
}

</mosaic_0001>

<llo_original>
// kernel: tpu_custom_call.1
$region0: #{tpu_custom_call.1}
  #allocation0 [shape = 'u32[]', space=smem, size = 0x4, offset = 0x4, fixed_abs, tag = 'smem constant byte address 0x4 - core index']
  #allocation1 [shape = 'u32[144,128]{1,0:T(1,128)}', space=vmem, size = 0x12000, scoped, tag = 'internal scratch']
  %s0 = inlined_call_operand.vmem [shape: f32[50,100], index: 0, kind: input, shape index: {}]
  %s1 = inlined_call_operand.vmem [shape: f32[100,10], index: 1, kind: input, shape index: {}]
  %s2 = inlined_call_operand.vmem [shape: f32[1,10], index: 2, kind: input, shape index: {}]
  %s3 = inlined_call_operand.vmem [shape: f32[10,2], index: 3, kind: input, shape index: {}]
  %s4 = inlined_call_operand.vmem [shape: f32[1,2], index: 4, kind: input, shape index: {}]
  %s5 = inlined_call_operand.vmem [shape: f32[50,2], index: 5, kind: output, shape index: {}]
  %s6 = sld [smem:[#allocation0]]
  $region101: #{tpu_custom_call.1} parent=0
    _
  %s8 = ssub.s32 1, %s6
  %s9 = scalar_select 0, %s8, %s6
  $region1: #{tpu_custom_call.1} parent=0
    #allocation2 [shape = 'u8[16384]{0}', space=vmem, size = 0x4000, scoped, tag = 'output window, operand 0']
    loop: start=0, step=1, limit=6
    $region2: #{tpu_custom_call.1} parent=1 // loop_pre_header
      _
    $region3: #{tpu_custom_call.1} parent=1 // loop_header
      %s11 = sphi 0, %s15
      %p12 = scmp.ge.s32.totalorder %s11, 6
      %s21 = sphi 0, %s23
      %s24 = sphi 0, %s21
      %s25 = sphi 0, %s24
      %s41 = sphi 0, %s25
      %s45 = sphi 0, %s45
      %s47 = sphi 0, %s45
      %s48 = sphi 0, %s47
      %s62 = sphi 0, %s48
      %s66 = sphi 0, %s66
      %s68 = sphi 0, %s66
      %s69 = sphi 0, %s68
      %s83 = sphi 0, %s69
      %s87 = sphi 0, %s87
      %s89 = sphi 0, %s87
      %s90 = sphi 0, %s89
      %s104 = sphi 0, %s90
      %s108 = sphi 0, %s108
      %s110 = sphi 0, %s108
      %s111 = sphi 0, %s110
      %s125 = sphi 0, %s111
      %s131 = sphi 0, %s133
      %s134 = sphi 0, %s131
      %s135 = sphi 0, %s134
      %s151 = sphi 0, %s135
    $region4: #{tpu_custom_call.1} parent=1 // loop_header_branch
      %14 = sbr.rel (%p12) target = $region8
    $region5: #{tpu_custom_call.1} parent=1 // loop_body
      %s16 = ssub.s32 %s11, 1
      %s17 = ssub.s32 %s11, 2
      %s18 = sadd.s32 %s11, 1
      %s19 = ssub.s32 %s11, %s18
      %p20 = scmp.eq.s32.totalorder %s19, 0
      %s22 = sadd.s32 %s21, 1
      %s23 = scalar_select %p20, %s21, %s22
      %p26 = pneg %p20
      %p27 = scmp.eq.s32.totalorder %s11, 3
      %p28 = por %p26, %p27
      %p29 = scmp.ne.s32.totalorder %s21, %s24
      %p30 = scmp.eq.s32.totalorder %s11, 0
      %p31 = por %p29, %p30
      %p32 = scmp.ne.s32.totalorder %s21, %s24
      %p33 = scmp.eq.s32.totalorder %s16, 3
      %p34 = por %p32, %p33
      %p35 = scmp.ne.s32.totalorder %s24, %s25
      %p36 = scmp.eq.s32.totalorder %s16, 0
      %p37 = por %p35, %p36
      %p38 = scmp.ne.s32.totalorder %s24, %s25
      %p39 = scmp.eq.s32.totalorder %s17, 3
      %p40 = por %p38, %p39
      %p42 = scmp.ne.s32.totalorder %s25, %s41
      %p43 = scmp.eq.s32.totalorder %s17, 0
      %p44 = por %p42, %p43
      %s46 = sadd.s32 %s45, 1
      %p49 = scmp.eq.s32.totalorder %s11, 3
      %p50 = scmp.ne.s32.totalorder %s45, %s47
      %p51 = scmp.eq.s32.totalorder %s11, 0
      %p52 = por %p50, %p51
      %p53 = scmp.ne.s32.totalorder %s45, %s47
      %p54 = scmp.eq.s32.totalorder %s16, 3
      %p55 = por %p53, %p54
      %p56 = scmp.ne.s32.totalorder %s47, %s48
      %p57 = scmp.eq.s32.totalorder %s16, 0
      %p58 = por %p56, %p57
      %p59 = scmp.ne.s32.totalorder %s47, %s48
      %p60 = scmp.eq.s32.totalorder %s17, 3
      %p61 = por %p59, %p60
      %p63 = scmp.ne.s32.totalorder %s48, %s62
      %p64 = scmp.eq.s32.totalorder %s17, 0
      %p65 = por %p63, %p64
      %s67 = sadd.s32 %s66, 1
      %p70 = scmp.eq.s32.totalorder %s11, 3
      %p71 = scmp.ne.s32.totalorder %s66, %s68
      %p72 = scmp.eq.s32.totalorder %s11, 0
      %p73 = por %p71, %p72
      %p74 = scmp.ne.s32.totalorder %s66, %s68
      %p75 = scmp.eq.s32.totalorder %s16, 3
      %p76 = por %p74, %p75
      %p77 = scmp.ne.s32.totalorder %s68, %s69
      %p78 = scmp.eq.s32.totalorder %s16, 0
      %p79 = por %p77, %p78
      %p80 = scmp.ne.s32.totalorder %s68, %s69
      %p81 = scmp.eq.s32.totalorder %s17, 3
      %p82 = por %p80, %p81
      %p84 = scmp.ne.s32.totalorder %s69, %s83
      %p85 = scmp.eq.s32.totalorder %s17, 0
      %p86 = por %p84, %p85
      %s88 = sadd.s32 %s87, 1
      %p91 = scmp.eq.s32.totalorder %s11, 3
      %p92 = scmp.ne.s32.totalorder %s87, %s89
      %p93 = scmp.eq.s32.totalorder %s11, 0
      %p94 = por %p92, %p93
      %p95 = scmp.ne.s32.totalorder %s87, %s89
      %p96 = scmp.eq.s32.totalorder %s16, 3
      %p97 = por %p95, %p96
      %p98 = scmp.ne.s32.totalorder %s89, %s90
      %p99 = scmp.eq.s32.totalorder %s16, 0
      %p100 = por %p98, %p99
      %p101 = scmp.ne.s32.totalorder %s89, %s90
      %p102 = scmp.eq.s32.totalorder %s17, 3
      %p103 = por %p101, %p102
      %p105 = scmp.ne.s32.totalorder %s90, %s104
      %p106 = scmp.eq.s32.totalorder %s17, 0
      %p107 = por %p105, %p106
      %s109 = sadd.s32 %s108, 1
      %p112 = scmp.eq.s32.totalorder %s11, 3
      %p113 = scmp.ne.s32.totalorder %s108, %s110
      %p114 = scmp.eq.s32.totalorder %s11, 0
      %p115 = por %p113, %p114
      %p116 = scmp.ne.s32.totalorder %s108, %s110
      %p117 = scmp.eq.s32.totalorder %s16, 3
      %p118 = por %p116, %p117
      %p119 = scmp.ne.s32.totalorder %s110, %s111
      %p120 = scmp.eq.s32.totalorder %s16, 0
      %p121 = por %p119, %p120
      %p122 = scmp.ne.s32.totalorder %s110, %s111
      %p123 = scmp.eq.s32.totalorder %s17, 3
      %p124 = por %p122, %p123
      %p126 = scmp.ne.s32.totalorder %s111, %s125
      %p127 = scmp.eq.s32.totalorder %s17, 0
      %p128 = por %p126, %p127
      %s129 = ssub.s32 %s11, %s18
      %p130 = scmp.eq.s32.totalorder %s129, 0
      %s132 = sadd.s32 %s131, 1
      %s133 = scalar_select %p130, %s131, %s132
      %p136 = pneg %p130
      %p137 = scmp.eq.s32.totalorder %s11, 3
      %p138 = por %p136, %p137
      %p139 = scmp.ne.s32.totalorder %s131, %s134
      %p140 = scmp.eq.s32.totalorder %s11, 0
      %p141 = por %p139, %p140
      %p142 = scmp.ne.s32.totalorder %s131, %s134
      %p143 = scmp.eq.s32.totalorder %s16, 3
      %p144 = por %p142, %p143
      %p145 = scmp.ne.s32.totalorder %s134, %s135
      %p146 = scmp.eq.s32.totalorder %s16, 0
      %p147 = por %p145, %p146
      %p148 = scmp.ne.s32.totalorder %s134, %s135
      %p149 = scmp.eq.s32.totalorder %s17, 3
      %p150 = por %p148, %p149
      %p152 = scmp.ne.s32.totalorder %s135, %s151
      %p153 = scmp.eq.s32.totalorder %s17, 0
      %p154 = por %p152, %p153
      %p155 = scmp.le.s32.totalorder 1, %s11
      %p156 = scmp.lt.s32.totalorder %s11, 5
      %p157 = pnand %p155, %p156
      %p158 = pneg %p157
      // Predicated region
      $region9: #{tpu_custom_call.1} parent=5 // pred_check
        _
      $region10: #{tpu_custom_call.1} parent=5 // pred_check_branch
        %160 = sbr.rel (%p157) target = $region12
      $region11: #{tpu_custom_call.1} parent=5 // pred_region
        %s161 = ssub.s32 %s11, 1
        // Predicated region
        $region13: #{tpu_custom_call.1} parent=11 // pred_check
          %p162 = pneg %p58
        $region14: #{tpu_custom_call.1} parent=11 // pred_check_branch
          %164 = sbr.rel (%p162) target = $region16
        $region15: #{tpu_custom_call.1} parent=11 // pred_region
          _
        $region16: #{tpu_custom_call.1} parent=11 // pred_fallthru
          _
        // Predicated region
        $region17: #{tpu_custom_call.1} parent=11 // pred_check
          %p165 = pneg %p79
        $region18: #{tpu_custom_call.1} parent=11 // pred_check_branch
          %167 = sbr.rel (%p165) target = $region20
        $region19: #{tpu_custom_call.1} parent=11 // pred_region
          _
        $region20: #{tpu_custom_call.1} parent=11 // pred_fallthru
          _
        // Predicated region
        $region21: #{tpu_custom_call.1} parent=11 // pred_check
          %p168 = pneg %p100
        $region22: #{tpu_custom_call.1} parent=11 // pred_check_branch
          %170 = sbr.rel (%p168) target = $region24
        $region23: #{tpu_custom_call.1} parent=11 // pred_region
          _
        $region24: #{tpu_custom_call.1} parent=11 // pred_fallthru
          _
        // Predicated region
        $region25: #{tpu_custom_call.1} parent=11 // pred_check
          %p171 = pneg %p121
        $region26: #{tpu_custom_call.1} parent=11 // pred_check_branch
          %173 = sbr.rel (%p171) target = $region28
        $region27: #{tpu_custom_call.1} parent=11 // pred_region
          _
        $region28: #{tpu_custom_call.1} parent=11 // pred_fallthru
          _
      $region12: #{tpu_custom_call.1} parent=5 // pred_fallthru
        _
      %p174 = scmp.lt.s32.totalorder %s11, 4
      // Predicated region
      $region29: #{tpu_custom_call.1} parent=5 // pred_check
        %p175 = pneg %p174
      $region30: #{tpu_custom_call.1} parent=5 // pred_check_branch
        %177 = sbr.rel (%p175) target = $region32
      $region31: #{tpu_custom_call.1} parent=5 // pred_region
        // Predicated region
        $region33: #{tpu_custom_call.1} parent=31 // pred_check
          %p178 = pneg %p31
        $region34: #{tpu_custom_call.1} parent=31 // pred_check_branch
          %180 = sbr.rel (%p178) target = $region36
        $region35: #{tpu_custom_call.1} parent=31 // pred_region
          %s181 = smul.u32 2, %s11
          %s182 = ssub.s32 7, %s181
          %p183 = scmp.lt.s32.totalorder %s182, 2
          %s184 = scalar_select %p183, %s182, 2
          %s185 = smul.u32 128, %s184
          %p186 = scmp.lt.s32.totalorder %s181, 6
          %s187 = scalar_select %p186, %s181, 6
          %s188 = smul.addr %s187, 8
          %s189 = scalar_lea.vmem %s0, %s188
          %s190 = smul.u32 2, %s11
          %s191 = ssub.s32 7, %s190
          %p192 = scmp.lt.s32.totalorder %s191, 2
          %s193 = scalar_select %p192, %s191, 2
          %s194 = smul.u32 128, %s193
        $region36: #{tpu_custom_call.1} parent=31 // pred_fallthru
          _
      $region32: #{tpu_custom_call.1} parent=5 // pred_fallthru
        _
      %p195 = scmp.le.s32.totalorder 1, %s11
      %p196 = scmp.lt.s32.totalorder %s11, 5
      %p197 = pnand %p195, %p196
      %p198 = pneg %p197
      // Predicated region
      $region37: #{tpu_custom_call.1} parent=5 // pred_check
        _
      $region38: #{tpu_custom_call.1} parent=5 // pred_check_branch
        %200 = sbr.rel (%p197) target = $region40
      $region39: #{tpu_custom_call.1} parent=5 // pred_region
        %s201 = ssub.s32 %s11, 1
        %s202 = smul.u32 2, %s16
        %s203 = ssub.s32 7, %s202
        %p204 = scmp.lt.s32.totalorder %s203, 2
        %s205 = scalar_select %p204, %s203, 2
        %s206 = smul.u32 128, %s205
        %p207 = scmp.lt.s32.totalorder %s202, 6
        %s208 = scalar_select %p207, %s202, 6
        %s209 = smul.addr %s208, 8
        %s210 = scalar_lea.vmem %s0, %s209
        %p211 = pneg %p37
        %p212 = pneg %p34
        %p213 = pneg %p58
        %p214 = pneg %p55
        %p215 = pneg %p79
        %p216 = pneg %p76
        %p217 = pneg %p100
        %p218 = pneg %p97
        %p219 = pneg %p121
        %p220 = pneg %p118
        %p221 = pneg %p147
        %p222 = pneg %p144
        %s223 = sand.u32 %s134, 1
        %s224 = sand.u32 %s134, 1
        %s225 = smul.addr %s224, 16
        %s226 = scalar_lea.vmem [#allocation2], %s225
        %s227 = smul.u32 2, %s16
        %s228 = ssub.s32 7, %s227
        %p229 = scmp.lt.s32.totalorder %s228, 2
        %s230 = scalar_select %p229, %s228, 2
        %s231 = smul.u32 128, %s230
        %p232 = scmp.lt.s32.totalorder %s227, 6
        %s233 = scalar_select %p232, %s227, 6
        %s234 = smul.addr %s233, 8
        %s235 = scalar_lea.vmem %s0, %s234
        %s236 = smul.u32 2, %s16
        %s237 = ssub.s32 7, %s236
        %p238 = scmp.lt.s32.totalorder %s237, 2
        %s239 = scalar_select %p238, %s237, 2
        %s240 = smul.u32 128, %s239
        %s241 = smul.u32 2, %s16
        %s242 = ssub.s32 7, %s241
        %p243 = scmp.lt.s32.totalorder %s242, 2
        %s244 = scalar_select %p243, %s242, 2
        %s245 = smul.u32 128, %s244
        %v246 = vld [vmem:[%s235] sm:$0xff]
        %v247 = vld [vmem:[%s235 + $0x8] sm:$0xff]
        %v248 = vld [vmem:[%s1] sm:$0xff]
        %v249 = vld [vmem:[%s1 + $0x8] sm:$0xff]
        %v250 = vld [vmem:[%s1 + $0x10] sm:$0xff]
        %v251 = vld [vmem:[%s1 + $0x18] sm:$0xff]
        %v252 = vld [vmem:[%s1 + $0x20] sm:$0xff]
        %v253 = vld [vmem:[%s1 + $0x28] sm:$0xff]
        %v254 = vld [vmem:[%s1 + $0x30] sm:$0xff]
        %v255 = vld [vmem:[%s1 + $0x38] sm:$0xff]
        %v256 = vld [vmem:[%s1 + $0x40] sm:$0xff]
        %v257 = vld [vmem:[%s1 + $0x48] sm:$0xff]
        %v258 = vld [vmem:[%s1 + $0x50] sm:$0xff]
        %v259 = vld [vmem:[%s1 + $0x58] sm:$0xff]
        %v260 = vld [vmem:[%s1 + $0x60] sm:$0xf]
        %v261 = vld [vmem:[%s2] sm:$0x1]
        %v263 = vlaneseq
        %v264 = vshrl.u32 %v263, 7
        %v265 = vsub.s32 0, %v264
        %v266 = vrot.slane %v261, %v265
        %vm268 = vcmask 818176
        %v270 = vsel %vm268, %v246, 0
        %v273 = vsel %vm268, %v247, 0
        %vm275 = vcmask 1043456
        %v277 = vsel %vm275, %v260, 0
        %279 = vmatprep.subr.mxu0 0.0
        %280 = vmatpush1.msra.mxu0 %v248
        %281 = vmatprep.subr.mxu0 0.0
        %282 = vmatpush1.msra.mxu0 %v249
        %283 = vmatprep.subr.mxu0 0.0
        %284 = vmatpush1.msra.mxu0 %v250
        %285 = vmatprep.subr.mxu0 0.0
        %286 = vmatpush1.msra.mxu0 %v251
        %287 = vmatprep.subr.mxu0 0.0
        %288 = vmatpush1.msra.mxu0 %v252
        %289 = vmatprep.subr.mxu0 0.0
        %290 = vmatpush1.msra.mxu0 %v253
        %291 = vmatprep.subr.mxu0 0.0
        %292 = vmatpush1.msra.mxu0 %v254
        %293 = vmatprep.subr.mxu0 0.0
        %294 = vmatpush1.msra.mxu0 %v255
        %295 = vmatprep.subr.mxu0 0.0
        %296 = vmatpush1.msra.mxu0 %v256
        %297 = vmatprep.subr.mxu0 0.0
        %298 = vmatpush1.msra.mxu0 %v257
        %299 = vmatprep.subr.mxu0 0.0
        %300 = vmatpush1.msra.mxu0 %v258
        %301 = vmatprep.subr.mxu0 0.0
        %302 = vmatpush1.msra.mxu0 %v259
        %303 = vmatprep.subr.mxu0 0.0
        %304 = vmatpush1.msra.mxu0 %v277
        %305 = vmatprep.subr.mxu0 0.0
        %306 = vmatpush1.msra.mxu0 0.0
        %307 = vmatprep.subr.mxu0 0.0
        %308 = vmatpush1.msra.mxu0 0.0
        %309 = vmatprep.subr.mxu0 0.0
        %310 = vmatpush1.msra.mxu0 0.0
        %311 = vmatprep.subr.mxu0 0.0
        %312 = vmatpush1.msra.mxu0 0.0
        %313 = vmatprep.subr.mxu0 0.0
        %314 = vmatpush1.msra.mxu0 0.0
        %315 = vmatprep.subr.mxu0 0.0
        %316 = vmatpush1.msra.mxu0 0.0
        %317 = vmatprep.subr.mxu0 0.0
        %318 = vmatpush1.msra.mxu0 0.0
        %319 = vmatprep.subr.mxu0 0.0
        %320 = vmatpush1.msra.mxu0 0.0
        %321 = vmatprep.subr.mxu0 0.0
        %322 = vmatpush1.msra.mxu0 0.0
        %323 = vmatprep.subr.mxu0 0.0
        %324 = vmatpush1.msra.mxu0 0.0
        %325 = vmatprep.subr.mxu0 0.0
        %326 = vmatpush1.msra.mxu0 0.0
        %327 = vmatprep.subr.mxu0 0.0
        %328 = vmatpush1.msra.mxu0 0.0
        %329 = vmatprep.subr.mxu0 0.0
        %330 = vmatpush1.msra.mxu0 0.0
        %331 = vmatprep.subr.mxu0 0.0
        %332 = vmatpush1.msra.mxu0 0.0
        %333 = vmatprep.subr.mxu0 0.0
        %334 = vmatpush1.msra.mxu0 0.0
        %335 = vmatprep.subr.mxu0 0.0
        %336 = vmatpush1.msra.mxu0 0.0
        %337 = vmatprep.subr.mxu0 0.0
        %338 = vmatpush1.msra.mxu0 0.0
        %339 = vmatprep.subr.mxu0 0.0
        %340 = vmatpush1.msra.mxu0 0.0
        %341 = vmatprep.subr.mxu0 0.0
        %342 = vmatpush1.msra.mxu0 0.0
        %343 = vmatprep.mubr.f32.mxu0 0.0
        %344 = vmatmul.mubr.f32.gmra.mrb[0].mxu0 %v270
        %v345 = vpop.f32.mrb[0].mxu0
        %v346 = vadd.f32 %v266, %v345
        %v347 = vpop.f32.mrb[0].mxu0
        %348 = vmatprep.mubr.f32.mxu0 0.0
        %349 = vmatmul.mubr.f32.gmra.mrb[0].mxu0 %v273
        %v350 = vpop.f32.mrb[0].mxu0
        %v351 = vadd.f32 %v266, %v350
        %v352 = vpop.f32.mrb[0].mxu0
        %353 = vdwg.mxu0
        %v354 = vmax.f32 %v346, 0.0
        %v355 = vmax.f32 %v351, 0.0
        %v356 = vld [vmem:[%s3] sm:$0xff]
        %v357 = vld [vmem:[%s3 + $0x8] sm:$0x3]
        %v358 = vld [vmem:[%s4] sm:$0x1]
        %v360 = vlaneseq
        %v361 = vshrl.u32 %v360, 7
        %v362 = vsub.s32 0, %v361
        %v363 = vrot.slane %v358, %v362
        %vm365 = vcmask 80896
        %v367 = vsel %vm365, %v354, 0
        %v370 = vsel %vm365, %v355, 0
        %vm372 = vcmask 1041408
        %v374 = vsel %vm372, %v357, 0
        %376 = vmatprep.subr.mxu0 0.0
        %377 = vmatpush1.msra.mxu0 %v356
        %378 = vmatprep.subr.mxu0 0.0
        %379 = vmatpush1.msra.mxu0 %v374
        %380 = vmatprep.subr.mxu0 0.0
        %381 = vmatpush1.msra.mxu0 0.0
        %382 = vmatprep.subr.mxu0 0.0
        %383 = vmatpush1.msra.mxu0 0.0
        %384 = vmatprep.subr.mxu0 0.0
        %385 = vmatpush1.msra.mxu0 0.0
        %386 = vmatprep.subr.mxu0 0.0
        %387 = vmatpush1.msra.mxu0 0.0
        %388 = vmatprep.subr.mxu0 0.0
        %389 = vmatpush1.msra.mxu0 0.0
        %390 = vmatprep.subr.mxu0 0.0
        %391 = vmatpush1.msra.mxu0 0.0
        %392 = vmatprep.subr.mxu0 0.0
        %393 = vmatpush1.msra.mxu0 0.0
        %394 = vmatprep.subr.mxu0 0.0
        %395 = vmatpush1.msra.mxu0 0.0
        %396 = vmatprep.subr.mxu0 0.0
        %397 = vmatpush1.msra.mxu0 0.0
        %398 = vmatprep.subr.mxu0 0.0
        %399 = vmatpush1.msra.mxu0 0.0
        %400 = vmatprep.subr.mxu0 0.0
        %401 = vmatpush1.msra.mxu0 0.0
        %402 = vmatprep.subr.mxu0 0.0
        %403 = vmatpush1.msra.mxu0 0.0
        %404 = vmatprep.subr.mxu0 0.0
        %405 = vmatpush1.msra.mxu0 0.0
        %406 = vmatprep.subr.mxu0 0.0
        %407 = vmatpush1.msra.mxu0 0.0
        %408 = vmatprep.subr.mxu0 0.0
        %409 = vmatpush1.msra.mxu0 0.0
        %410 = vmatprep.subr.mxu0 0.0
        %411 = vmatpush1.msra.mxu0 0.0
        %412 = vmatprep.subr.mxu0 0.0
        %413 = vmatpush1.msra.mxu0 0.0
        %414 = vmatprep.subr.mxu0 0.0
        %415 = vmatpush1.msra.mxu0 0.0
        %416 = vmatprep.subr.mxu0 0.0
        %417 = vmatpush1.msra.mxu0 0.0
        %418 = vmatprep.subr.mxu0 0.0
        %419 = vmatpush1.msra.mxu0 0.0
        %420 = vmatprep.subr.mxu0 0.0
        %421 = vmatpush1.msra.mxu0 0.0
        %422 = vmatprep.subr.mxu0 0.0
        %423 = vmatpush1.msra.mxu0 0.0
        %424 = vmatprep.subr.mxu0 0.0
        %425 = vmatpush1.msra.mxu0 0.0
        %426 = vmatprep.subr.mxu0 0.0
        %427 = vmatpush1.msra.mxu0 0.0
        %428 = vmatprep.subr.mxu0 0.0
        %429 = vmatpush1.msra.mxu0 0.0
        %430 = vmatprep.subr.mxu0 0.0
        %431 = vmatpush1.msra.mxu0 0.0
        %432 = vmatprep.subr.mxu0 0.0
        %433 = vmatpush1.msra.mxu0 0.0
        %434 = vmatprep.subr.mxu0 0.0
        %435 = vmatpush1.msra.mxu0 0.0
        %436 = vmatprep.subr.mxu0 0.0
        %437 = vmatpush1.msra.mxu0 0.0
        %438 = vmatprep.subr.mxu0 0.0
        %439 = vmatpush1.msra.mxu0 0.0
        %440 = vmatprep.mubr.f32.mxu0 0.0
        %441 = vmatmul.mubr.f32.gmra.mrb[0].mxu0 %v367
        %v442 = vpop.f32.mrb[0].mxu0
        %v443 = vadd.f32 %v363, %v442
        %v444 = vpop.f32.mrb[0].mxu0
        %445 = vmatprep.mubr.f32.mxu0 0.0
        %446 = vmatmul.mubr.f32.gmra.mrb[0].mxu0 %v370
        %v447 = vpop.f32.mrb[0].mxu0
        %v448 = vadd.f32 %v363, %v447
        %v449 = vpop.f32.mrb[0].mxu0
        %450 = vdwg.mxu0
        %v451 = vmax.f32 %v443, 0.0
        %v452 = vmax.f32 %v448, 0.0
        %vm453 = vcmask 15360
        %454 = vst.msk [vmem:[%s226] sm:$0xff] %vm453, %v451
        %455 = vst.msk [vmem:[%s226 + $0x8] sm:$0xff] %vm453, %v452
        %s456 = sand.u32 %s134, 1
        %s457 = sand.u32 %s134, 1
        %s458 = smul.addr %s457, 16
        %s459 = scalar_lea.vmem [#allocation2], %s458
        // Predicated region
        $region41: #{tpu_custom_call.1} parent=39 // pred_check
          %p460 = pneg %p144
        $region42: #{tpu_custom_call.1} parent=39 // pred_check_branch
          %462 = sbr.rel (%p460) target = $region44
        $region43: #{tpu_custom_call.1} parent=39 // pred_region
          %s463 = smul.u32 2, %s16
          %s464 = ssub.s32 7, %s463
          %p465 = scmp.lt.s32.totalorder %s464, 2
          %s466 = scalar_select %p465, %s464, 2
          %s467 = smul.u32 128, %s466
          %p468 = scmp.ne.s32.totalorder 0, %s467
          %s469 = smul.addr %s463, 8
          %s470 = scalar_lea.vmem %s5, %s469
          // Predicated region
          $region45: #{tpu_custom_call.1} parent=43 // pred_check
            %p471 = pneg %p468
          $region46: #{tpu_custom_call.1} parent=43 // pred_check_branch
            %473 = sbr.rel (%p471) target = $region48
          $region47: #{tpu_custom_call.1} parent=43 // pred_region
            // Predicated region
            $region49: #{tpu_custom_call.1} parent=47 // pred_check
              _
            $region50: #{tpu_custom_call.1} parent=47 // pred_check_branch
              %475 = sbr.rel (0) target = $region52
            $region51: #{tpu_custom_call.1} parent=47 // pred_region
              // Predicated region
              $region71: #{tpu_custom_call.1} parent=51 // pred_check
                _
              $region72: #{tpu_custom_call.1} parent=51 // pred_check_branch
                %526 = sbr.rel (0) target = $region74
              $region73: #{tpu_custom_call.1} parent=51 // pred_region
                %s527 = sshrl.u32 %s466, 1
                // While loop
                $region75: #{tpu_custom_call.1} parent=73 // loop_pre_header
                  _
                $region76: #{tpu_custom_call.1} parent=73 // loop_header
                  %s529 = sphi 0, %s531
                  %p530 = scmp.ge.s32.totalorder %s529, %s527
                  %s534 = sphi 0, %s543
                  %s535 = sphi %s459, %s546
                  %s536 = sphi %s470, %s547
                $region77: #{tpu_custom_call.1} parent=73 // loop_header_branch
                  %533 = sbr.rel (%p530) target = $region81
                $region78: #{tpu_custom_call.1} parent=73 // loop_body
                  %v537 = vld [vmem:[%s535] sm:$0xff]
                  %538 = vst [vmem:[%s536] sm:$0xff] %v537
                  %v539 = vld [vmem:[%s535 + $0x8] sm:$0xff]
                  %540 = vst [vmem:[%s536 + $0x8] sm:$0xff] %v539
                  %s541 = sadd.s32 1, %s534
                  %p542 = scmp.ge.s32.totalorder %s541, %s527
                  %s543 = scalar_select %p542, 0, %s541
                  %s544 = smul.u32 %s543, 16
                  %s545 = smul.u32 %s543, 16
                  %s546 = scalar_lea.vmem %s459, %s544 [#allocation2]
                  %s547 = scalar_lea.vmem %s470, %s545
                $region79: #{tpu_custom_call.1} parent=73 // loop_footer
                  %s531 = sadd.s32 %s529, 1
                $region80: #{tpu_custom_call.1} parent=73 // loop_footer_branch
                  %528 = sbr.rel target = $region76
                $region81: #{tpu_custom_call.1} parent=73 // loop_exit
                  _
                %s548 = sshrl.u32 %s466, 1
                %s549 = sand.u32 %s466, 1
                %s550 = smul.u32 %s548, 2
                %s551 = smul.u32 8, %s550
                %s552 = scalar_lea.vmem %s459, %s551 [#allocation2]
                %s553 = smul.u32 8, %s550
                %s554 = scalar_lea.vmem %s470, %s553
                // While loop
                $region82: #{tpu_custom_call.1} parent=73 // loop_pre_header
                  _
                $region83: #{tpu_custom_call.1} parent=73 // loop_header
                  %s556 = sphi 0, %s558
                  %p557 = scmp.ge.s32.totalorder %s556, %s549
                  %s561 = sphi 0, %s568
                  %s562 = sphi %s552, %s571
                  %s563 = sphi %s554, %s572
                $region84: #{tpu_custom_call.1} parent=73 // loop_header_branch
                  %560 = sbr.rel (%p557) target = $region88
                $region85: #{tpu_custom_call.1} parent=73 // loop_body
                  %v564 = vld [vmem:[%s562] sm:$0xff]
                  %565 = vst [vmem:[%s563] sm:$0xff] %v564
                  %s566 = sadd.s32 1, %s561
                  %p567 = scmp.ge.s32.totalorder %s566, %s549
                  %s568 = scalar_select %p567, 0, %s566
                  %s569 = smul.u32 %s568, 8
                  %s570 = smul.u32 %s568, 8
                  %s571 = scalar_lea.vmem %s552, %s569 [#allocation2]
                  %s572 = scalar_lea.vmem %s554, %s570
                $region86: #{tpu_custom_call.1} parent=73 // loop_footer
                  %s558 = sadd.s32 %s556, 1
                $region87: #{tpu_custom_call.1} parent=73 // loop_footer_branch
                  %555 = sbr.rel target = $region83
                $region88: #{tpu_custom_call.1} parent=73 // loop_exit
                  _
              $region74: #{tpu_custom_call.1} parent=51 // pred_fallthru
                _
              // Predicated region
              $region89: #{tpu_custom_call.1} parent=51 // pred_check
                _
              $region90: #{tpu_custom_call.1} parent=51 // pred_check_branch
                %574 = sbr.rel target = $region92
              $region91: #{tpu_custom_call.1} parent=51 // pred_region
                _
              $region92: #{tpu_custom_call.1} parent=51 // pred_fallthru
                _
            $region52: #{tpu_custom_call.1} parent=47 // pred_fallthru
              _
            // Predicated region
            $region53: #{tpu_custom_call.1} parent=47 // pred_check
              _
            $region54: #{tpu_custom_call.1} parent=47 // pred_check_branch
              %477 = sbr.rel target = $region56
            $region55: #{tpu_custom_call.1} parent=47 // pred_region
              %s479 = sshrl.u32 %s466, 1
              // While loop
              $region57: #{tpu_custom_call.1} parent=55 // loop_pre_header
                _
              $region58: #{tpu_custom_call.1} parent=55 // loop_header
                %s481 = sphi 0, %s483
                %p482 = scmp.ge.s32.totalorder %s481, %s479
                %s486 = sphi 0, %s495
                %s487 = sphi %s459, %s498
                %s488 = sphi %s470, %s499
              $region59: #{tpu_custom_call.1} parent=55 // loop_header_branch
                %485 = sbr.rel (%p482) target = $region63
              $region60: #{tpu_custom_call.1} parent=55 // loop_body
                %v489 = vld [vmem:[%s487] sm:$0xff]
                %490 = vst [vmem:[%s488] sm:$0xff] %v489
                %v491 = vld [vmem:[%s487 + $0x8] sm:$0xff]
                %492 = vst [vmem:[%s488 + $0x8] sm:$0xff] %v491
                %s493 = sadd.s32 1, %s486
                %p494 = scmp.ge.s32.totalorder %s493, %s479
                %s495 = scalar_select %p494, 0, %s493
                %s496 = smul.u32 %s495, 16
                %s497 = smul.u32 %s495, 16
                %s498 = scalar_lea.vmem %s459, %s496 [#allocation2]
                %s499 = scalar_lea.vmem %s470, %s497
              $region61: #{tpu_custom_call.1} parent=55 // loop_footer
                %s483 = sadd.s32 %s481, 1
              $region62: #{tpu_custom_call.1} parent=55 // loop_footer_branch
                %480 = sbr.rel target = $region58
              $region63: #{tpu_custom_call.1} parent=55 // loop_exit
                _
              %s500 = sshrl.u32 %s466, 1
              %s501 = sand.u32 %s466, 1
              %s502 = smul.u32 %s500, 2
              %s503 = smul.u32 8, %s502
              %s504 = scalar_lea.vmem %s459, %s503 [#allocation2]
              %s505 = smul.u32 8, %s502
              %s506 = scalar_lea.vmem %s470, %s505
              // While loop
              $region64: #{tpu_custom_call.1} parent=55 // loop_pre_header
                _
              $region65: #{tpu_custom_call.1} parent=55 // loop_header
                %s508 = sphi 0, %s510
                %p509 = scmp.ge.s32.totalorder %s508, %s501
                %s513 = sphi 0, %s520
                %s514 = sphi %s504, %s523
                %s515 = sphi %s506, %s524
              $region66: #{tpu_custom_call.1} parent=55 // loop_header_branch
                %512 = sbr.rel (%p509) target = $region70
              $region67: #{tpu_custom_call.1} parent=55 // loop_body
                %v516 = vld [vmem:[%s514] sm:$0xff]
                %517 = vst [vmem:[%s515] sm:$0xff] %v516
                %s518 = sadd.s32 1, %s513
                %p519 = scmp.ge.s32.totalorder %s518, %s501
                %s520 = scalar_select %p519, 0, %s518
                %s521 = smul.u32 %s520, 8
                %s522 = smul.u32 %s520, 8
                %s523 = scalar_lea.vmem %s504, %s521 [#allocation2]
                %s524 = scalar_lea.vmem %s506, %s522
              $region68: #{tpu_custom_call.1} parent=55 // loop_footer
                %s510 = sadd.s32 %s508, 1
              $region69: #{tpu_custom_call.1} parent=55 // loop_footer_branch
                %507 = sbr.rel target = $region65
              $region70: #{tpu_custom_call.1} parent=55 // loop_exit
                _
            $region56: #{tpu_custom_call.1} parent=47 // pred_fallthru
              _
          $region48: #{tpu_custom_call.1} parent=43 // pred_fallthru
            _
          %575 = vnop
        $region44: #{tpu_custom_call.1} parent=39 // pred_fallthru
          _
      $region40: #{tpu_custom_call.1} parent=5 // pred_fallthru
        _
      %p576 = scmp.le.s32.totalorder 2, %s11
      // Predicated region
      $region93: #{tpu_custom_call.1} parent=5 // pred_check
        %p577 = pneg %p576
      $region94: #{tpu_custom_call.1} parent=5 // pred_check_branch
        %579 = sbr.rel (%p577) target = $region96
      $region95: #{tpu_custom_call.1} parent=5 // pred_region
        %s580 = ssub.s32 %s11, 2
        // Predicated region
        $region97: #{tpu_custom_call.1} parent=95 // pred_check
          %p581 = pneg %p150
        $region98: #{tpu_custom_call.1} parent=95 // pred_check_branch
          %583 = sbr.rel (%p581) target = $region100
        $region99: #{tpu_custom_call.1} parent=95 // pred_region
          %s584 = sand.u32 %s135, 1
          %s585 = sand.u32 %s135, 1
          %s586 = smul.addr %s585, 16
          %s587 = scalar_lea.vmem [#allocation2], %s586
        $region100: #{tpu_custom_call.1} parent=95 // pred_fallthru
          _
      $region96: #{tpu_custom_call.1} parent=5 // pred_fallthru
        _
    $region6: #{tpu_custom_call.1} parent=1 // loop_footer
      %s15 = sadd.s32 1, %s11
    $region7: #{tpu_custom_call.1} parent=1 // loop_footer_branch
      %10 = sbr.rel target = $region3
    $region8: #{tpu_custom_call.1} parent=1 // loop_exit
      _

</llo_original>
